<compile_context>
chip_gen: v7x
topology: tpu7x:2x2x1
jax: 0.10.0
libtpu: 0.0.40
codegen_flags: <defaults>
</compile_context>

<pallas_src>
import jax
import jax.numpy as jnp
import numpy as np
from jax.experimental import pallas as pl
from jax.experimental.pallas import tpu as pltpu


def _cdiv(a, b):
    return -(-a // b)


def _round_up(a, b):
    return _cdiv(a, b) * b


def _distance_kernel(a_ref, sel_ref, mu_ref, o_ref):
    # a_ref  : (T, K)  f32  per-edge pre-scaled value, split into bf16-exact
    #                       pieces (K = round_up(3*G, 8) columns, zero padded)
    # sel_ref: (K, W)  f32  {0,1} one-hot lane-group expansion matrix (resident)
    # mu_ref : (1, W)  f32  mu/sigma tiled over the G lane groups (resident)
    # o_ref  : (T, W)  f32  lane-dense output: edge = G*row + lane//D, feat = lane%D
    #
    # MXU: broadcast each edge scalar over its D-lane group (exact one-hot dot).
    a_b = jnp.dot(a_ref[...], sel_ref[...], preferred_element_type=jnp.float32)
    # VPU: subtract + square; EUP: exp.  (+square, no negation, as in PyTorch.)
    d = a_b - mu_ref[...]
    o_ref[...] = jnp.exp(jnp.square(d))


def distance_block(edge_type, edge_distance, gain_table, offset_table, mu, sigma,
                   *, tile_rows=2048, min_grid_steps=4):
    """Pallas implementation of DistanceBlock.forward.

    edge_type:     (..., E)    int
    edge_distance: (..., E, 1) float32
    returns:       (..., E, D) float32
    """
    batch_shape = edge_type.shape
    D = int(mu.shape[-1])
    N = int(np.prod(batch_shape))
    inv_sigma = 1.0 / float(sigma)

    # Lane-folding factor: pack G edges per 128-lane output row (G=4 for D=32).
    G = 128 // D if (D <= 128 and 128 % D == 0) else 1
    W = G * D

    # --- glue (tiny, fuses in XLA): gather + affine + 1/sigma pre-scale ------
    flat_type = edge_type.reshape(N).astype(jnp.int32)
    gain = gain_table.reshape(-1)[flat_type].astype(jnp.float32)       # (N,)
    offset = offset_table.reshape(-1)[flat_type].astype(jnp.float32)   # (N,)
    dist = edge_distance.reshape(N).astype(jnp.float32)                # (N,)
    a_s = (gain * dist + offset) * inv_sigma                           # (N,)

    # Split a_s into three bf16-exact pieces (a_s == hi + mid + lo, exactly).
    # This keeps the in-kernel one-hot MXU broadcast exact under any bf16
    # decomposition of the f32 matmul.
    a_hi = a_s.astype(jnp.bfloat16).astype(jnp.float32)
    r1 = a_s - a_hi                                                    # exact
    a_mid = r1.astype(jnp.bfloat16).astype(jnp.float32)
    a_lo = r1 - a_mid                                                  # exact

    # --- tiling ---------------------------------------------------------------
    R_need = _cdiv(N, G)              # exact number of lane-dense output rows
    N_ceil = R_need * G

    tile_r = int(tile_rows)
    # Give the v7x megacore ("parallel" grid axis) at least `min_grid_steps`
    # steps to shard, as long as each step still gets a sizeable tile.
    if R_need >= 256 * min_grid_steps:
        tile_r = min(tile_r, _round_up(_cdiv(R_need, min_grid_steps), 8))
    tile_r = max(8, min(tile_r, _round_up(R_need, 8)))                 # mult of 8
    num_blocks = _cdiv(R_need, tile_r)
    R_pad = num_blocks * tile_r       # input rows are padded so every input
    N_pad = R_pad * G                 # block is fully in-bounds; the OUTPUT is
                                      # emitted at R_need rows (ragged final
                                      # block masked by Pallas -> no slice copy).

    ncol = 3 * G
    ncol_pad = _round_up(ncol, 8)     # pad the contraction dim to a sublane mult

    def to_cols(v):
        if N_pad != N:
            v = jnp.pad(v, (0, N_pad - N))
        return v.reshape(R_pad, G)

    cols = [to_cols(a_hi), to_cols(a_mid), to_cols(a_lo)]
    if ncol_pad > ncol:
        cols.append(jnp.zeros((R_pad, ncol_pad - ncol), jnp.float32))
    a_cols = jnp.concatenate(cols, axis=1)                             # (R_pad, K)

    # One-hot expansion matrix: column c (piece p, edge-in-row g = c % G)
    # maps to the lanes of group g; padded rows are zero.
    lane_grp = np.arange(W) // D                                       # (W,)
    col_grp = np.tile(np.arange(G), 3)                                 # (3G,)
    sel_np = np.zeros((ncol_pad, W), np.float32)
    sel_np[:ncol, :] = (col_grp[:, None] == lane_grp[None, :]).astype(np.float32)
    sel = jnp.asarray(sel_np)                                          # (K, W)

    # mu pre-scaled by 1/sigma and tiled over the G lane groups.
    mu_w = jnp.tile(mu.reshape(1, D).astype(jnp.float32) * inv_sigma, (1, G))  # (1, W)

    out = pl.pallas_call(
        _distance_kernel,
        out_shape=jax.ShapeDtypeStruct((R_need, W), jnp.float32),
        grid_spec=pltpu.PrefetchScalarGridSpec(
            num_scalar_prefetch=0,
            grid=(num_blocks,),
            in_specs=[
                pl.BlockSpec((tile_r, ncol_pad), lambda i: (i, 0)),
                # Constant block index -> copied in once and kept resident.
                pl.BlockSpec((ncol_pad, W), lambda i: (0, 0)),
                pl.BlockSpec((1, W), lambda i: (0, 0)),
            ],
            out_specs=pl.BlockSpec((tile_r, W), lambda i: (i, 0)),
        ),
        compiler_params=pltpu.CompilerParams(
            dimension_semantics=("parallel",)),   # shards the grid over v7x's 2 TCs
    )(a_cols, sel, mu_w)

    # (R_need, W) row-major is the same memory as (N_ceil, D): free reshape.
    out = out.reshape(N_ceil, D)
    if N_ceil != N:
        # TODO(synk): only hit when N % G != 0; callers with G-aligned (padded)
        # edge counts never pay this slice copy.
        out = out[:N]
    return out.reshape(*batch_shape, D)


def distance_block_ref(edge_type, edge_distance, gain_table, offset_table, mu, sigma):
    """Pure-JAX reference mirroring the PyTorch forward exactly."""
    gain = gain_table[edge_type]       # (..., E, 1)
    offset = offset_table[edge_type]   # (..., E, 1)
    d = gain * edge_distance + offset - mu  # (..., E, D)
    return jnp.exp(jnp.square(d / sigma))


if __name__ == "__main__":
    # Module hyperparameters
    delta = 5.0
    D = 32
    sigma = 1.5
    edge_types = 10

    # Deterministic synthetic parameters. Embedding weights are scaled by 0.25 so
    # the (un-negated!) exp(square(.)) of the module stays well inside f32 range.
    key = jax.random.PRNGKey(0)
    k_gain, k_offset, k_type, k_dist, k_type2, k_dist2 = jax.random.split(key, 6)
    gain_table = 0.25 * jax.random.normal(k_gain, (edge_types, 1), dtype=jnp.float32)
    offset_table = 0.25 * jax.random.normal(k_offset, (edge_types, 1), dtype=jnp.float32)
    mu = jnp.linspace(0.0, delta, D, dtype=jnp.float32)

    def check(edge_type, edge_distance):
        out = distance_block(edge_type, edge_distance, gain_table, offset_table, mu, sigma)
        out = jax.block_until_ready(out)
        ref = distance_block_ref(edge_type, edge_distance, gain_table, offset_table, mu, sigma)
        assert out.shape == ref.shape, (out.shape, ref.shape)
        # The kernel pre-scales by 1/sigma instead of dividing (per review); this
        # differs from true division by ~1-2 ulps of the exp argument.  exp()
        # amplifies argument error by ~2|d| (here up to ~12), so a few-ulp
        # difference (plus exp-implementation ulps) shows up as ~2-4e-5 relative
        # error; rtol=2e-4 keeps ample margin while still catching real bugs.
        np.testing.assert_allclose(np.asarray(out), np.asarray(ref), rtol=2e-4, atol=1e-6)

    # Small shape (B=2, E=8): single grid step, exercises padding, lane folding,
    # and a ragged (masked) output block.
    B, E = 2, 8
    edge_type = jax.random.randint(k_type, (B, E), 0, edge_types, dtype=jnp.int32)
    edge_distance = jax.random.uniform(
        k_dist, (B, E, 1), dtype=jnp.float32, minval=0.0, maxval=delta)
    check(edge_type, edge_distance)

    # Larger shape (B=2, E=2500): 4 grid steps (megacore-shardable) + ragged
    # final output block, no post-kernel slice copy.
    B2, E2 = 2, 2500
    edge_type2 = jax.random.randint(k_type2, (B2, E2), 0, edge_types, dtype=jnp.int32)
    edge_distance2 = jax.random.uniform(
        k_dist2, (B2, E2, 1), dtype=jnp.float32, minval=0.0, maxval=delta)
    check(edge_type2, edge_distance2)

    print("KERNEL_OK")
</pallas_src>

<mosaic_0001>
module attributes {stable_mosaic.version = 11 : i64} {
  func.func @_distance_kernel(%arg0: i32, %arg1: memref<8x16xf32, #tpu.memory_space<vmem>>, %arg2: memref<16x128xf32, #tpu.memory_space<vmem>>, %arg3: memref<1x128xf32, #tpu.memory_space<vmem>>, %arg4: memref<8x128xf32, #tpu.memory_space<vmem>>) attributes {dimension_semantics = [#tpu.dimension_semantics<parallel>], iteration_bounds = array<i64: 1>, scalar_prefetch = 0 : i64, scratch_operands = 0 : i64, tpu.core_type = #tpu.core_type<tc>, window_params = [{transform_indices = @transform_0, window_bounds = array<i64: 8, 16>}, {pipeline_mode = #tpu.pipeline_mode<synchronous>, transform_indices = @transform_1, window_bounds = array<i64: 16, 128>}, {pipeline_mode = #tpu.pipeline_mode<synchronous>, transform_indices = @transform_2, window_bounds = array<i64: 1, 128>}, {transform_indices = @transform_3, window_bounds = array<i64: 8, 128>}]} {
    %c0 = arith.constant 0 : index
    %c0_0 = arith.constant 0 : index
    %0 = vector.load %arg1[%c0, %c0_0] : memref<8x16xf32, #tpu.memory_space<vmem>>, vector<8x16xf32>
    %c0_1 = arith.constant 0 : index
    %c0_2 = arith.constant 0 : index
    %1 = vector.load %arg2[%c0_1, %c0_2] : memref<16x128xf32, #tpu.memory_space<vmem>>, vector<16x128xf32>
    %cst = arith.constant dense<0.000000e+00> : vector<8x128xf32>
    %2 = tpu.matmul %0, %1, %cst {dimension_numbers = #tpu.dot_dimension_numbers<[1], [0], [0], [1], [0, 0, 1, 1], [], []>} : vector<8x16xf32>, vector<16x128xf32>, vector<8x128xf32> -> vector<8x128xf32>
    %c0_3 = arith.constant 0 : index
    %c0_4 = arith.constant 0 : index
    %3 = vector.load %arg3[%c0_3, %c0_4] : memref<1x128xf32, #tpu.memory_space<vmem>>, vector<1x128xf32>
    %4 = vector.broadcast %3 : vector<1x128xf32> to vector<8x128xf32>
    %5 = arith.subf %2, %4 : vector<8x128xf32>
    %6 = arith.mulf %5, %5 : vector<8x128xf32>
    %7 = math.exp %6 : vector<8x128xf32>
    %c0_5 = arith.constant 0 : index
    %c0_6 = arith.constant 0 : index
    %8 = vector.load %arg4[%c0_5, %c0_6] : memref<8x128xf32, #tpu.memory_space<vmem>>, vector<8x128xf32>
    tpu.vector_store %arg4[%c0_5, %c0_6], %7 {strides = array<i32>} : memref<8x128xf32, #tpu.memory_space<vmem>>, vector<8x128xf32>,
    return
  }
  func.func @transform_0(%arg0: i32) -> (i32, i32) {
    %c0_i32 = arith.constant 0 : i32
    %c0_i32_0 = arith.constant 0 : i32
    return %arg0, %c0_i32 : i32, i32
  }
  func.func @transform_1(%arg0: i32) -> (i32, i32) {
    %c0_i32 = arith.constant 0 : i32
    %c0_i32_0 = arith.constant 0 : i32
    %c0_i32_1 = arith.constant 0 : i32
    return %c0_i32, %c0_i32_0 : i32, i32
  }
  func.func @transform_2(%arg0: i32) -> (i32, i32) {
    %c0_i32 = arith.constant 0 : i32
    %c0_i32_0 = arith.constant 0 : i32
    %c0_i32_1 = arith.constant 0 : i32
    return %c0_i32, %c0_i32_0 : i32, i32
  }
  func.func @transform_3(%arg0: i32) -> (i32, i32) {
    %c0_i32 = arith.constant 0 : i32
    %c0_i32_0 = arith.constant 0 : i32
    return %arg0, %c0_i32 : i32, i32
  }
}

</mosaic_0001>

<llo_original>
// kernel: tpu_custom_call.1
$region0: #{tpu_custom_call.1}
  #allocation0 [shape = 'u32[]', space=smem, size = 0x4, offset = 0x4, fixed_abs, tag = 'smem constant byte address 0x4 - core index']
  #allocation1 [shape = 'u32[144,128]{1,0:T(1,128)}', space=vmem, size = 0x12000, scoped, tag = 'internal scratch']
  %s0 = inlined_call_operand.hbm [shape: f32[8,16], index: 0, kind: input, shape index: {}]
  %s1 = inlined_call_operand.hbm [shape: f32[16,128], index: 1, kind: input, shape index: {}]
  %s2 = inlined_call_operand.vmem [shape: f32[1,128], index: 2, kind: input, shape index: {}]
  %s3 = inlined_call_operand.hbm [shape: f32[4,128], index: 3, kind: output, shape index: {}]
  %s4 = sld [smem:[#allocation0]]
  $region30: #{tpu_custom_call.1} parent=0
    _
  %s6 = ssub.s32 1, %s4
  %s7 = scalar_select 0, %s6, %s4
  $region1: #{tpu_custom_call.1} parent=0
    #allocation2 [shape = 'u8[4096]{0}', space=vmem, size = 0x1000, scoped, tag = 'input window, operand 0, single buffered']
    #allocation3 [shape = 's32[1]{0}', space=sflag, size = 0x4, scoped, tag = 'scoped memory for tpu_custom_call.1']
    #allocation4 [shape = 's32[1]{0}', space=sflag, size = 0x4, scoped, tag = 'scoped memory for tpu_custom_call.1']
    #allocation5 [shape = 'u8[8192]{0}', space=vmem, size = 0x2000, scoped, tag = 'input window, operand 1, single buffered']
    #allocation6 [shape = 's32[1]{0}', space=sflag, size = 0x4, scoped, tag = 'scoped memory for tpu_custom_call.1']
    #allocation7 [shape = 'u8[4096]{0}', space=vmem, size = 0x1000, scoped, tag = 'output window, operand 0, single buffered']
    %8 = vsyncpa [#allocation3], 0
    %9 = vsyncpa [#allocation6], 0
    %10 = vsyncpa [#allocation4], 0
    // Predicated region
    $region2: #{tpu_custom_call.1} parent=1 // pred_check
      _
    $region3: #{tpu_custom_call.1} parent=1 // pred_check_branch
      %12 = sbr.rel (0) target = $region5
    $region4: #{tpu_custom_call.1} parent=1 // pred_region
      %s14 = ssub.s32 128, 128
      %15 = vsyncadd [#allocation3], %s14
      %s17 = sshll.u32 [#allocation2], 4
      %s18 = int_to_ptr.vmem [resolvable:$true] %s17
      %20 = dma.hbm_to_vmem [thread:$0]  %s0, 128, %s18, [#allocation3]
    $region5: #{tpu_custom_call.1} parent=1 // pred_fallthru
      _
    // Predicated region
    $region6: #{tpu_custom_call.1} parent=1 // pred_check
      _
    $region7: #{tpu_custom_call.1} parent=1 // pred_check_branch
      %22 = sbr.rel (0) target = $region9
    $region8: #{tpu_custom_call.1} parent=1 // pred_region
      %s24 = ssub.s32 256, 256
      %25 = vsyncadd [#allocation6], %s24
      %s26 = sshll.u32 [#allocation5], 4
      %s27 = int_to_ptr.vmem [resolvable:$true] %s26
      %32 = dma.hbm_to_vmem [thread:$0]  %s1, 256, %s27, [#allocation6], 128, 128, 8
    $region9: #{tpu_custom_call.1} parent=1 // pred_fallthru
      _
    // Predicated region
    $region10: #{tpu_custom_call.1} parent=1 // pred_check
      _
    $region11: #{tpu_custom_call.1} parent=1 // pred_check_branch
      %34 = sbr.rel (0) target = $region13
    $region12: #{tpu_custom_call.1} parent=1 // pred_region
      _
    $region13: #{tpu_custom_call.1} parent=1 // pred_fallthru
      _
    // Predicated region
    $region14: #{tpu_custom_call.1} parent=1 // pred_check
      _
    $region15: #{tpu_custom_call.1} parent=1 // pred_check_branch
      %36 = sbr.rel (0) target = $region17
    $region16: #{tpu_custom_call.1} parent=1 // pred_region
      %37 = dma.done [#allocation3], 128
    $region17: #{tpu_custom_call.1} parent=1 // pred_fallthru
      _
    // Predicated region
    $region18: #{tpu_custom_call.1} parent=1 // pred_check
      _
    $region19: #{tpu_custom_call.1} parent=1 // pred_check_branch
      %39 = sbr.rel (0) target = $region21
    $region20: #{tpu_custom_call.1} parent=1 // pred_region
      %40 = dma.done [#allocation6], 256
    $region21: #{tpu_custom_call.1} parent=1 // pred_fallthru
      _
    %v41 = vld [vmem:[#allocation2] sm:$0xff]
    %v42 = vld [vmem:[#allocation5] sm:$0xff]
    %v43 = vld [vmem:[#allocation5 + $0x8] sm:$0xff]
    %vm44 = vcmask 130048
    %v46 = vsel %vm44, %v41, 0
    %48 = vmatprep.subr.mxu0 0.0
    %49 = vmatpush1.msra.mxu0 %v42
    %50 = vmatprep.subr.mxu0 0.0
    %51 = vmatpush1.msra.mxu0 %v43
    %52 = vmatprep.subr.mxu0 0.0
    %53 = vmatpush1.msra.mxu0 0.0
    %54 = vmatprep.subr.mxu0 0.0
    %55 = vmatpush1.msra.mxu0 0.0
    %56 = vmatprep.subr.mxu0 0.0
    %57 = vmatpush1.msra.mxu0 0.0
    %58 = vmatprep.subr.mxu0 0.0
    %59 = vmatpush1.msra.mxu0 0.0
    %60 = vmatprep.subr.mxu0 0.0
    %61 = vmatpush1.msra.mxu0 0.0
    %62 = vmatprep.subr.mxu0 0.0
    %63 = vmatpush1.msra.mxu0 0.0
    %64 = vmatprep.subr.mxu0 0.0
    %65 = vmatpush1.msra.mxu0 0.0
    %66 = vmatprep.subr.mxu0 0.0
    %67 = vmatpush1.msra.mxu0 0.0
    %68 = vmatprep.subr.mxu0 0.0
    %69 = vmatpush1.msra.mxu0 0.0
    %70 = vmatprep.subr.mxu0 0.0
    %71 = vmatpush1.msra.mxu0 0.0
    %72 = vmatprep.subr.mxu0 0.0
    %73 = vmatpush1.msra.mxu0 0.0
    %74 = vmatprep.subr.mxu0 0.0
    %75 = vmatpush1.msra.mxu0 0.0
    %76 = vmatprep.subr.mxu0 0.0
    %77 = vmatpush1.msra.mxu0 0.0
    %78 = vmatprep.subr.mxu0 0.0
    %79 = vmatpush1.msra.mxu0 0.0
    %80 = vmatprep.subr.mxu0 0.0
    %81 = vmatpush1.msra.mxu0 0.0
    %82 = vmatprep.subr.mxu0 0.0
    %83 = vmatpush1.msra.mxu0 0.0
    %84 = vmatprep.subr.mxu0 0.0
    %85 = vmatpush1.msra.mxu0 0.0
    %86 = vmatprep.subr.mxu0 0.0
    %87 = vmatpush1.msra.mxu0 0.0
    %88 = vmatprep.subr.mxu0 0.0
    %89 = vmatpush1.msra.mxu0 0.0
    %90 = vmatprep.subr.mxu0 0.0
    %91 = vmatpush1.msra.mxu0 0.0
    %92 = vmatprep.subr.mxu0 0.0
    %93 = vmatpush1.msra.mxu0 0.0
    %94 = vmatprep.subr.mxu0 0.0
    %95 = vmatpush1.msra.mxu0 0.0
    %96 = vmatprep.subr.mxu0 0.0
    %97 = vmatpush1.msra.mxu0 0.0
    %98 = vmatprep.subr.mxu0 0.0
    %99 = vmatpush1.msra.mxu0 0.0
    %100 = vmatprep.subr.mxu0 0.0
    %101 = vmatpush1.msra.mxu0 0.0
    %102 = vmatprep.subr.mxu0 0.0
    %103 = vmatpush1.msra.mxu0 0.0
    %104 = vmatprep.subr.mxu0 0.0
    %105 = vmatpush1.msra.mxu0 0.0
    %106 = vmatprep.subr.mxu0 0.0
    %107 = vmatpush1.msra.mxu0 0.0
    %108 = vmatprep.subr.mxu0 0.0
    %109 = vmatpush1.msra.mxu0 0.0
    %110 = vmatprep.subr.mxu0 0.0
    %111 = vmatpush1.msra.mxu0 0.0
    %112 = vmatprep.mubr.f32.mxu0 0.0
    %113 = vmatmul.mubr.f32.gmra.mrb[0].mxu0 %v46
    %v114 = vpop.f32.mrb[0].mxu0
    %v115 = vadd.f32 0.0, %v114
    %v116 = vpop.f32.mrb[0].mxu0
    %117 = vdwg.mxu0
    %v118 = vld [vmem:[%s2] sm:$0x1]
    %v120 = vlaneseq
    %v121 = vshrl.u32 %v120, 7
    %v122 = vsub.s32 0, %v121
    %v123 = vrot.slane %v118, %v122
    %v125 = vsub.f32 %v115, %v123
    %v126 = vmul.f32 %v125, %v125
    %v127 = vmul.f32 %v126, 1.442695
    %v128 = vpow.pop %v127
    %129 = vst [vmem:[#allocation7] sm:$0xff] %v128
    // Predicated region
    $region22: #{tpu_custom_call.1} parent=1 // pred_check
      _
    $region23: #{tpu_custom_call.1} parent=1 // pred_check_branch
      %131 = sbr.rel (0) target = $region25
    $region24: #{tpu_custom_call.1} parent=1 // pred_region
      %s133 = ssub.s32 128, 64
      %134 = vsyncadd [#allocation4], %s133
      %s135 = sshll.u32 [#allocation7], 4
      %s136 = int_to_ptr.vmem [resolvable:$true] %s135
      %141 = dma.vmem_to_hbm [thread:$0]  %s136, 64, %s3, [#allocation4], 64, 64, 4
    $region25: #{tpu_custom_call.1} parent=1 // pred_fallthru
      _
    // Predicated region
    $region26: #{tpu_custom_call.1} parent=1 // pred_check
      _
    $region27: #{tpu_custom_call.1} parent=1 // pred_check_branch
      %143 = sbr.rel (0) target = $region29
    $region28: #{tpu_custom_call.1} parent=1 // pred_region
      %144 = dma.done [#allocation4], 128
    $region29: #{tpu_custom_call.1} parent=1 // pred_fallthru
      _
    %145 = vsyncpa [#allocation3], 1
    %146 = vsyncpa [#allocation6], 1
    %147 = vsyncpa [#allocation4], 1

</llo_original>
